<compile_context>
chip_gen: v7x
topology: tpu7x:2x2x1
jax: 0.10.0
libtpu: 0.0.40
codegen_flags: <defaults>
</compile_context>

<pallas_src>
import jax
import jax.numpy as jnp
from jax import lax
from jax.experimental import pallas as pl
from jax.experimental.pallas import tpu as pltpu

# ---- module hyperparameters (from prototype.py) ----
BLOCK_SIZE = 8      # max sequence length T
N_EMBED    = 32     # C
NUM_HEADS  = 4
HEAD_SIZE  = 8      # NUM_HEADS * HEAD_SIZE == N_EMBED


def mha_kernel(x_ref, wqkv_ref, wp_ref, bp_ref, o_ref):
    """Fused multi-head self-attention for BB batch elements.

    x_ref    : (BB*T, C)  f32   flattened input rows (row = (batch, position))
    wqkv_ref : (C, 3*H*hs) bf16 fused [q | k | v] projection, head-major cols
    wp_ref   : (C, C)      bf16 output projection
    bp_ref   : (1, C)      f32  output projection bias
    o_ref    : (BB*T, C)   f32  output rows
    """
    T, H, HS, C = BLOCK_SIZE, NUM_HEADS, HEAD_SIZE, N_EMBED
    BBT = x_ref.shape[0]
    BB = BBT // T
    hb = H * BB                                            # fused (head, batch) dim

    x = x_ref[...].astype(jnp.bfloat16)                    # bf16 MXU operand

    # --- single fused Q/K/V projection: one MXU matmul, lane-dense result ---
    qkv = jnp.dot(x, wqkv_ref[...],
                  preferred_element_type=jnp.float32)      # (BBT, 96) f32

    # --- split per (head, batch): static lane slices + sublane reshapes +
    #     leading-dim concat only (no extra MXU work) ---
    def split_heads(base):
        parts = [
            qkv[:, base + h * HS: base + (h + 1) * HS].reshape(BB, T, HS)
            for h in range(H)
        ]
        # head-major: hb index = h * BB + b
        return jnp.concatenate(parts, axis=0).astype(jnp.bfloat16)   # (hb, T, HS)

    q = split_heads(0)
    k = split_heads(H * HS)
    v = split_heads(2 * H * HS)

    # --- scores: batched q @ k^T over (head, batch); contraction over hs,
    #     no explicit transpose ---
    scale = C ** (-0.5)                                    # module scales by C^-0.5
    s = lax.dot_general(
        q, k,
        dimension_numbers=(((2,), (2,)), ((0,), (0,))),
        preferred_element_type=jnp.float32) * scale        # (hb, T, T) f32

    # --- causal mask, generated in-kernel as an additive bias ---
    row = lax.broadcasted_iota(jnp.int32, (T, T), 0)
    col = lax.broadcasted_iota(jnp.int32, (T, T), 1)
    s = s + jnp.where(row >= col, 0.0, -1e30).astype(jnp.float32)

    # --- softmax in f32 (EUP approximate reciprocal for the denominator) ---
    s = s - jnp.max(s, axis=-1, keepdims=True)
    e = jnp.exp(s)
    p = e * pl.reciprocal(jnp.sum(e, axis=-1, keepdims=True), approx=True)

    # --- attention-weighted values (bf16 operands, f32 accumulate) ---
    att = lax.dot_general(
        p.astype(jnp.bfloat16), v,
        dimension_numbers=(((2,), (1,)), ((0,), (0,))),
        preferred_element_type=jnp.float32)                # (hb, T, HS) f32

    # --- head-concat folded into ONE output projection:
    #     repack lane-dense (BBT, H*hs) then a single (BBT,32)@(32,32) matmul ---
    att_cat = jnp.concatenate(
        [att[h * BB:(h + 1) * BB].reshape(BBT, HS) for h in range(H)],
        axis=1)                                            # (BBT, H*HS)
    out = jnp.dot(att_cat.astype(jnp.bfloat16), wp_ref[...],
                  preferred_element_type=jnp.float32) + bp_ref[...]
    o_ref[...] = out.astype(o_ref.dtype)


def _choose_block_batch(B, max_bb):
    """Largest batch-block <= max_bb dividing B, keeping >= 2 grid steps when
    possible so ("parallel",) can shard the batch axis across v7x's two TCs."""
    target = max(1, min(max_bb, B // 2 if B >= 2 else 1))
    for bb in range(target, 0, -1):
        if B % bb == 0:
            return bb
    return 1


def multi_head_attention(x, wq, wk, wv, wp, bp, *, max_block_batch=64):
    """x: (B, T, C) float32.  Weights in 'x @ W' orientation:
       wq/wk/wv: (C, H*hs) with head h in columns [h*hs:(h+1)*hs];
       wp: (C, C); bp: (C,)."""
    B, T, C = x.shape
    assert T == BLOCK_SIZE and C == N_EMBED
    H, HS = NUM_HEADS, HEAD_SIZE

    BB = _choose_block_batch(B, max_block_batch)
    grid = (B // BB,)

    # ---- wrapper-side weight packing: fused qkv columns, bf16 MXU operands ----
    w_qkv = jnp.concatenate([wq, wk, wv], axis=1).astype(jnp.bfloat16)  # (C, 3*H*hs)
    wp_b = wp.astype(jnp.bfloat16)                                      # (C, C)
    bp2 = bp.reshape(1, C).astype(jnp.float32)

    x2d = x.reshape(B * T, C)

    out2d = pl.pallas_call(
        mha_kernel,
        out_shape=jax.ShapeDtypeStruct((B * T, C), x.dtype),
        grid_spec=pltpu.PrefetchScalarGridSpec(
            num_scalar_prefetch=0,
            grid=grid,
            in_specs=[
                pl.BlockSpec((BB * T, C), lambda i: (i, 0)),            # x rows
                pl.BlockSpec((C, 3 * H * HS), lambda i: (0, 0)),        # fused qkv W
                pl.BlockSpec((C, C), lambda i: (0, 0)),                 # out-proj W
                pl.BlockSpec((1, C), lambda i: (0, 0)),                 # out-proj bias
            ],
            out_specs=pl.BlockSpec((BB * T, C), lambda i: (i, 0)),
        ),
        compiler_params=pltpu.CompilerParams(
            dimension_semantics=("parallel",),
            vmem_limit_bytes=48 * 1024 * 1024,   # safe on v5e/v6e; < v7x's 64 MiB
        ),
    )(x2d, w_qkv, wp_b, bp2)

    return out2d.reshape(B, T, C)


def reference(x, wq, wk, wv, wp, bp):
    """Pure-JAX reference mirroring the PyTorch forward (eval mode)."""
    B, T, C = x.shape
    tril = jnp.tril(jnp.ones((T, T), dtype=jnp.float32))
    q = x @ wq
    k = x @ wk
    v = x @ wv
    scale = C ** (-0.5)
    outs = []
    for h in range(NUM_HEADS):
        lo, hi = h * HEAD_SIZE, (h + 1) * HEAD_SIZE
        s = jnp.einsum('btd,bsd->bts', q[..., lo:hi], k[..., lo:hi]) * scale
        s = jnp.where(tril == 0.0, -jnp.inf, s)
        p = jax.nn.softmax(s, axis=-1)
        outs.append(jnp.einsum('bts,bsd->btd', p, v[..., lo:hi]))
    return jnp.concatenate(outs, axis=-1) @ wp + bp


if __name__ == "__main__":
    key = jax.random.PRNGKey(0)
    keys = jax.random.split(key, 6)

    def init(k, shape):
        return (jax.random.uniform(k, shape, dtype=jnp.float32) - 0.5) * 0.2

    wq = init(keys[1], (N_EMBED, NUM_HEADS * HEAD_SIZE))
    wk = init(keys[2], (N_EMBED, NUM_HEADS * HEAD_SIZE))
    wv = init(keys[3], (N_EMBED, NUM_HEADS * HEAD_SIZE))
    wp = init(keys[4], (N_EMBED, N_EMBED))
    bp = init(keys[5], (N_EMBED,))

    # B=2: BB=1 -> 2 tiny grid steps; B=64: BB=32 -> 2 grid steps (exercises
    # batch blocking and the >=2-step megacore constraint).
    for B in (2, 64):
        x = jax.random.normal(jax.random.fold_in(keys[0], B),
                              (B, BLOCK_SIZE, N_EMBED), dtype=jnp.float32)
        out = jax.block_until_ready(multi_head_attention(x, wq, wk, wv, wp, bp))
        ref = reference(x, wq, wk, wv, wp, bp)
        assert out.shape == (B, BLOCK_SIZE, N_EMBED)
        # tolerance covers bf16 MXU operands + EUP approximate reciprocal
        # (measured error is ~1e-3; 2e-2 leaves comfortable margin).
        assert jnp.allclose(out, ref, atol=2e-2, rtol=2e-2), "mismatch vs reference"

    print("KERNEL_OK")
</pallas_src>

<mosaic_0001>
module attributes {stable_mosaic.version = 11 : i64} {
  func.func @mha_kernel(%arg0: i32, %arg1: memref<8x32xf32, #tpu.memory_space<vmem>>, %arg2: memref<32x96xbf16, #tpu.memory_space<vmem>>, %arg3: memref<32x32xbf16, #tpu.memory_space<vmem>>, %arg4: memref<1x32xf32, #tpu.memory_space<vmem>>, %arg5: memref<8x32xf32, #tpu.memory_space<vmem>>) attributes {dimension_semantics = [#tpu.dimension_semantics<parallel>], iteration_bounds = array<i64: 2>, scalar_prefetch = 0 : i64, scratch_operands = 0 : i64, tpu.core_type = #tpu.core_type<tc>, window_params = [{transform_indices = @transform_0, window_bounds = array<i64: 8, 32>}, {pipeline_mode = #tpu.pipeline_mode<synchronous>, transform_indices = @transform_1, window_bounds = array<i64: 32, 96>}, {pipeline_mode = #tpu.pipeline_mode<synchronous>, transform_indices = @transform_2, window_bounds = array<i64: 32, 32>}, {pipeline_mode = #tpu.pipeline_mode<synchronous>, transform_indices = @transform_3, window_bounds = array<i64: 1, 32>}, {transform_indices = @transform_4, window_bounds = array<i64: 8, 32>}]} {
    %c0 = arith.constant 0 : index
    %c0_0 = arith.constant 0 : index
    %0 = vector.load %arg1[%c0, %c0_0] : memref<8x32xf32, #tpu.memory_space<vmem>>, vector<8x32xf32>
    %1 = arith.truncf %0 : vector<8x32xf32> to vector<8x32xbf16>
    %c0_1 = arith.constant 0 : index
    %c0_2 = arith.constant 0 : index
    %2 = vector.load %arg2[%c0_1, %c0_2] : memref<32x96xbf16, #tpu.memory_space<vmem>>, vector<32x96xbf16>
    %cst = arith.constant dense<0.000000e+00> : vector<8x96xf32>
    %3 = tpu.matmul %1, %2, %cst {dimension_numbers = #tpu.dot_dimension_numbers<[1], [0], [0], [1], [0, 0, 1, 1], [], []>} : vector<8x32xbf16>, vector<32x96xbf16>, vector<8x96xf32> -> vector<8x96xf32>
    %4 = vector.extract_strided_slice %3 {offsets = [0, 0], sizes = [8, 8], strides = [1, 1]} : vector<8x96xf32> to vector<8x8xf32>
    %5 = vector.shape_cast %4 : vector<8x8xf32> to vector<1x8x8xf32>
    %6 = vector.extract_strided_slice %3 {offsets = [0, 8], sizes = [8, 8], strides = [1, 1]} : vector<8x96xf32> to vector<8x8xf32>
    %7 = vector.shape_cast %6 : vector<8x8xf32> to vector<1x8x8xf32>
    %8 = vector.extract_strided_slice %3 {offsets = [0, 16], sizes = [8, 8], strides = [1, 1]} : vector<8x96xf32> to vector<8x8xf32>
    %9 = vector.shape_cast %8 : vector<8x8xf32> to vector<1x8x8xf32>
    %10 = vector.extract_strided_slice %3 {offsets = [0, 24], sizes = [8, 8], strides = [1, 1]} : vector<8x96xf32> to vector<8x8xf32>
    %11 = vector.shape_cast %10 : vector<8x8xf32> to vector<1x8x8xf32>
    %12 = tpu.concatenate %5, %7, %9, %11 in 0 : vector<1x8x8xf32>, vector<1x8x8xf32>, vector<1x8x8xf32>, vector<1x8x8xf32> -> vector<4x8x8xf32>
    %13 = arith.truncf %12 : vector<4x8x8xf32> to vector<4x8x8xbf16>
    %14 = vector.extract_strided_slice %3 {offsets = [0, 32], sizes = [8, 8], strides = [1, 1]} : vector<8x96xf32> to vector<8x8xf32>
    %15 = vector.shape_cast %14 : vector<8x8xf32> to vector<1x8x8xf32>
    %16 = vector.extract_strided_slice %3 {offsets = [0, 40], sizes = [8, 8], strides = [1, 1]} : vector<8x96xf32> to vector<8x8xf32>
    %17 = vector.shape_cast %16 : vector<8x8xf32> to vector<1x8x8xf32>
    %18 = vector.extract_strided_slice %3 {offsets = [0, 48], sizes = [8, 8], strides = [1, 1]} : vector<8x96xf32> to vector<8x8xf32>
    %19 = vector.shape_cast %18 : vector<8x8xf32> to vector<1x8x8xf32>
    %20 = vector.extract_strided_slice %3 {offsets = [0, 56], sizes = [8, 8], strides = [1, 1]} : vector<8x96xf32> to vector<8x8xf32>
    %21 = vector.shape_cast %20 : vector<8x8xf32> to vector<1x8x8xf32>
    %22 = tpu.concatenate %15, %17, %19, %21 in 0 : vector<1x8x8xf32>, vector<1x8x8xf32>, vector<1x8x8xf32>, vector<1x8x8xf32> -> vector<4x8x8xf32>
    %23 = arith.truncf %22 : vector<4x8x8xf32> to vector<4x8x8xbf16>
    %24 = vector.extract_strided_slice %3 {offsets = [0, 64], sizes = [8, 8], strides = [1, 1]} : vector<8x96xf32> to vector<8x8xf32>
    %25 = vector.shape_cast %24 : vector<8x8xf32> to vector<1x8x8xf32>
    %26 = vector.extract_strided_slice %3 {offsets = [0, 72], sizes = [8, 8], strides = [1, 1]} : vector<8x96xf32> to vector<8x8xf32>
    %27 = vector.shape_cast %26 : vector<8x8xf32> to vector<1x8x8xf32>
    %28 = vector.extract_strided_slice %3 {offsets = [0, 80], sizes = [8, 8], strides = [1, 1]} : vector<8x96xf32> to vector<8x8xf32>
    %29 = vector.shape_cast %28 : vector<8x8xf32> to vector<1x8x8xf32>
    %30 = vector.extract_strided_slice %3 {offsets = [0, 88], sizes = [8, 8], strides = [1, 1]} : vector<8x96xf32> to vector<8x8xf32>
    %31 = vector.shape_cast %30 : vector<8x8xf32> to vector<1x8x8xf32>
    %32 = tpu.concatenate %25, %27, %29, %31 in 0 : vector<1x8x8xf32>, vector<1x8x8xf32>, vector<1x8x8xf32>, vector<1x8x8xf32> -> vector<4x8x8xf32>
    %33 = arith.truncf %32 : vector<4x8x8xf32> to vector<4x8x8xbf16>
    %cst_3 = arith.constant dense<0.000000e+00> : vector<4x8x8xf32>
    %34 = tpu.matmul %13, %23, %cst_3 {dimension_numbers = #tpu.dot_dimension_numbers<[2], [2], [1], [1], [0, 0, 0, 1, 1, 1], [0], [0]>} : vector<4x8x8xbf16>, vector<4x8x8xbf16>, vector<4x8x8xf32> -> vector<4x8x8xf32>
    %cst_4 = arith.constant 0.176776692 : f32
    %35 = vector.broadcast %cst_4 : f32 to vector<4x8x8xf32>
    %36 = arith.mulf %34, %35 : vector<4x8x8xf32>
    %37 = tpu.iota {dimensions = array<i32: 0>} : vector<8x8xi32>
    %38 = tpu.iota {dimensions = array<i32: 1>} : vector<8x8xi32>
    %39 = arith.cmpi sge, %37, %38 : vector<8x8xi32>
    %cst_5 = arith.constant 0.000000e+00 : f32
    %cst_6 = arith.constant -1.000000e+30 : f32
    %40 = vector.broadcast %cst_5 : f32 to vector<8x8xf32>
    %41 = vector.broadcast %cst_6 : f32 to vector<8x8xf32>
    %42 = arith.select %39, %40, %41 : vector<8x8xi1>, vector<8x8xf32>
    %43 = vector.shape_cast %42 : vector<8x8xf32> to vector<1x8x8xf32>
    %44 = vector.broadcast %43 : vector<1x8x8xf32> to vector<4x8x8xf32>
    %45 = arith.addf %36, %44 : vector<4x8x8xf32>
    %cst_7 = arith.constant dense<0xFF800000> : vector<4x8xf32>
    %46 = vector.multi_reduction <maximumf>, %45, %cst_7 [2] : vector<4x8x8xf32> to vector<4x8xf32>
    %47 = vector.shape_cast %46 : vector<4x8xf32> to vector<4x8x1xf32>
    %48 = vector.broadcast %47 : vector<4x8x1xf32> to vector<4x8x8xf32>
    %49 = arith.subf %45, %48 : vector<4x8x8xf32>
    %50 = math.exp %49 : vector<4x8x8xf32>
    %cst_8 = arith.constant dense<0.000000e+00> : vector<4x8xf32>
    %51 = vector.multi_reduction <add>, %50, %cst_8 [2] : vector<4x8x8xf32> to vector<4x8xf32>
    %52 = vector.shape_cast %51 : vector<4x8xf32> to vector<4x8x1xf32>
    %53 = tpu.reciprocal %52 {approx = true} : vector<4x8x1xf32> -> vector<4x8x1xf32>
    %54 = vector.broadcast %53 : vector<4x8x1xf32> to vector<4x8x8xf32>
    %55 = arith.mulf %50, %54 : vector<4x8x8xf32>
    %56 = arith.truncf %55 : vector<4x8x8xf32> to vector<4x8x8xbf16>
    %cst_9 = arith.constant dense<0.000000e+00> : vector<4x8x8xf32>
    %57 = tpu.matmul %56, %33, %cst_9 {dimension_numbers = #tpu.dot_dimension_numbers<[2], [1], [1], [2], [0, 0, 0, 1, 1, 2], [0], [0]>} : vector<4x8x8xbf16>, vector<4x8x8xbf16>, vector<4x8x8xf32> -> vector<4x8x8xf32>
    %58 = vector.extract_strided_slice %57 {offsets = [0, 0, 0], sizes = [1, 8, 8], strides = [1, 1, 1]} : vector<4x8x8xf32> to vector<1x8x8xf32>
    %59 = vector.shape_cast %58 : vector<1x8x8xf32> to vector<8x8xf32>
    %60 = vector.extract_strided_slice %57 {offsets = [1, 0, 0], sizes = [1, 8, 8], strides = [1, 1, 1]} : vector<4x8x8xf32> to vector<1x8x8xf32>
    %61 = vector.shape_cast %60 : vector<1x8x8xf32> to vector<8x8xf32>
    %62 = vector.extract_strided_slice %57 {offsets = [2, 0, 0], sizes = [1, 8, 8], strides = [1, 1, 1]} : vector<4x8x8xf32> to vector<1x8x8xf32>
    %63 = vector.shape_cast %62 : vector<1x8x8xf32> to vector<8x8xf32>
    %64 = vector.extract_strided_slice %57 {offsets = [3, 0, 0], sizes = [1, 8, 8], strides = [1, 1, 1]} : vector<4x8x8xf32> to vector<1x8x8xf32>
    %65 = vector.shape_cast %64 : vector<1x8x8xf32> to vector<8x8xf32>
    %66 = tpu.concatenate %59, %61, %63, %65 in 1 : vector<8x8xf32>, vector<8x8xf32>, vector<8x8xf32>, vector<8x8xf32> -> vector<8x32xf32>
    %67 = arith.truncf %66 : vector<8x32xf32> to vector<8x32xbf16>
    %c0_10 = arith.constant 0 : index
    %c0_11 = arith.constant 0 : index
    %68 = vector.load %arg3[%c0_10, %c0_11] : memref<32x32xbf16, #tpu.memory_space<vmem>>, vector<32x32xbf16>
    %cst_12 = arith.constant dense<0.000000e+00> : vector<8x32xf32>
    %69 = tpu.matmul %67, %68, %cst_12 {dimension_numbers = #tpu.dot_dimension_numbers<[1], [0], [0], [1], [0, 0, 1, 1], [], []>} : vector<8x32xbf16>, vector<32x32xbf16>, vector<8x32xf32> -> vector<8x32xf32>
    %c0_13 = arith.constant 0 : index
    %c0_14 = arith.constant 0 : index
    %70 = vector.load %arg4[%c0_13, %c0_14] : memref<1x32xf32, #tpu.memory_space<vmem>>, vector<1x32xf32>
    %71 = vector.broadcast %70 : vector<1x32xf32> to vector<8x32xf32>
    %72 = arith.addf %69, %71 : vector<8x32xf32>
    %c0_15 = arith.constant 0 : index
    %c0_16 = arith.constant 0 : index
    %73 = vector.load %arg5[%c0_15, %c0_16] : memref<8x32xf32, #tpu.memory_space<vmem>>, vector<8x32xf32>
    tpu.vector_store %arg5[%c0_15, %c0_16], %72 {strides = array<i32>} : memref<8x32xf32, #tpu.memory_space<vmem>>, vector<8x32xf32>,
    return
  }
  func.func @transform_0(%arg0: i32) -> (i32, i32) {
    %c0_i32 = arith.constant 0 : i32
    %c0_i32_0 = arith.constant 0 : i32
    return %arg0, %c0_i32 : i32, i32
  }
  func.func @transform_1(%arg0: i32) -> (i32, i32) {
    %c0_i32 = arith.constant 0 : i32
    %c0_i32_0 = arith.constant 0 : i32
    %c0_i32_1 = arith.constant 0 : i32
    return %c0_i32, %c0_i32_0 : i32, i32
  }
  func.func @transform_2(%arg0: i32) -> (i32, i32) {
    %c0_i32 = arith.constant 0 : i32
    %c0_i32_0 = arith.constant 0 : i32
    %c0_i32_1 = arith.constant 0 : i32
    return %c0_i32, %c0_i32_0 : i32, i32
  }
  func.func @transform_3(%arg0: i32) -> (i32, i32) {
    %c0_i32 = arith.constant 0 : i32
    %c0_i32_0 = arith.constant 0 : i32
    %c0_i32_1 = arith.constant 0 : i32
    return %c0_i32, %c0_i32_0 : i32, i32
  }
  func.func @transform_4(%arg0: i32) -> (i32, i32) {
    %c0_i32 = arith.constant 0 : i32
    %c0_i32_0 = arith.constant 0 : i32
    return %arg0, %c0_i32 : i32, i32
  }
}

</mosaic_0001>

<llo_original>
// kernel: tpu_custom_call.1
$region0: #{tpu_custom_call.1}
  #allocation0 [shape = 'u32[]', space=smem, size = 0x4, offset = 0x4, fixed_abs, tag = 'smem constant byte address 0x4 - core index']
  #allocation1 [shape = 'u32[144,128]{1,0:T(1,128)}', space=vmem, size = 0x12000, scoped, tag = 'internal scratch']
  %s0 = inlined_call_operand.hbm [shape: f32[16,32], index: 0, kind: input, shape index: {}]
  %s1 = inlined_call_operand.hbm [shape: bf16[32,96], index: 1, kind: input, shape index: {}]
  %s2 = inlined_call_operand.hbm [shape: bf16[32,32], index: 2, kind: input, shape index: {}]
  %s3 = inlined_call_operand.vmem [shape: f32[1,32], index: 3, kind: input, shape index: {}]
  %s4 = inlined_call_operand.hbm [shape: f32[16,32], index: 4, kind: output, shape index: {}]
  %s5 = sld [smem:[#allocation0]]
  $region61: #{tpu_custom_call.1} parent=0
    _
  %s7 = ssub.s32 1, %s5
  %s8 = scalar_select 0, %s7, %s5
  $region1: #{tpu_custom_call.1} parent=0
    #allocation2 [shape = 'u8[8192]{0}', space=vmem, size = 0x2000, scoped, tag = 'input window, operand 0']
    #allocation3 [shape = 's32[2]{0}', space=sflag, size = 0x8, scoped, tag = 'scoped memory for tpu_custom_call.1']
    #allocation4 [shape = 's32[2]{0}', space=sflag, size = 0x8, scoped, tag = 'scoped memory for tpu_custom_call.1']
    #allocation5 [shape = 'u8[8192]{0}', space=vmem, size = 0x2000, scoped, tag = 'input window, operand 1, single buffered']
    #allocation6 [shape = 's32[1]{0}', space=sflag, size = 0x4, scoped, tag = 'scoped memory for tpu_custom_call.1']
    #allocation7 [shape = 'u8[8192]{0}', space=vmem, size = 0x2000, scoped, tag = 'input window, operand 2, single buffered']
    #allocation8 [shape = 'u8[8192]{0}', space=vmem, size = 0x2000, scoped, tag = 'output window, operand 0']
    %9 = vsyncpa [#allocation3], 0
    %s10 = scalar_lea.sflag [#allocation3], 1
    %11 = vsyncpa %s10, 0
    %12 = vsyncpa [#allocation6], 0
    %13 = vsyncpa [#allocation4], 0
    %s14 = scalar_lea.sflag [#allocation4], 1
    %15 = vsyncpa %s14, 0
    loop: start=0, step=1, limit=4
    $region2: #{tpu_custom_call.1} parent=1 // loop_pre_header
      _
    $region3: #{tpu_custom_call.1} parent=1 // loop_header
      %s17 = sphi 0, %s21
      %p18 = scmp.ge.s32.totalorder %s17, 4
      %s27 = sphi 0, %s29
      %s30 = sphi 0, %s27
      %s31 = sphi 0, %s30
      %s47 = sphi 0, %s31
      %s51 = sphi 0, %s51
      %s53 = sphi 0, %s51
      %s54 = sphi 0, %s53
      %s68 = sphi 0, %s54
      %s72 = sphi 0, %s72
      %s74 = sphi 0, %s72
      %s75 = sphi 0, %s74
      %s89 = sphi 0, %s75
      %s93 = sphi 0, %s93
      %s95 = sphi 0, %s93
      %s96 = sphi 0, %s95
      %s110 = sphi 0, %s96
      %s116 = sphi 0, %s118
      %s119 = sphi 0, %s116
      %s120 = sphi 0, %s119
      %s136 = sphi 0, %s120
    $region4: #{tpu_custom_call.1} parent=1 // loop_header_branch
      %20 = sbr.rel (%p18) target = $region8
    $region5: #{tpu_custom_call.1} parent=1 // loop_body
      %s22 = ssub.s32 %s17, 1
      %s23 = ssub.s32 %s17, 2
      %s24 = sadd.s32 %s17, 1
      %s25 = ssub.s32 %s17, %s24
      %p26 = scmp.eq.s32.totalorder %s25, 0
      %s28 = sadd.s32 %s27, 1
      %s29 = scalar_select %p26, %s27, %s28
      %p32 = pneg %p26
      %p33 = scmp.eq.s32.totalorder %s17, 1
      %p34 = por %p32, %p33
      %p35 = scmp.ne.s32.totalorder %s27, %s30
      %p36 = scmp.eq.s32.totalorder %s17, 0
      %p37 = por %p35, %p36
      %p38 = scmp.ne.s32.totalorder %s27, %s30
      %p39 = scmp.eq.s32.totalorder %s22, 1
      %p40 = por %p38, %p39
      %p41 = scmp.ne.s32.totalorder %s30, %s31
      %p42 = scmp.eq.s32.totalorder %s22, 0
      %p43 = por %p41, %p42
      %p44 = scmp.ne.s32.totalorder %s30, %s31
      %p45 = scmp.eq.s32.totalorder %s23, 1
      %p46 = por %p44, %p45
      %p48 = scmp.ne.s32.totalorder %s31, %s47
      %p49 = scmp.eq.s32.totalorder %s23, 0
      %p50 = por %p48, %p49
      %s52 = sadd.s32 %s51, 1
      %p55 = scmp.eq.s32.totalorder %s17, 1
      %p56 = scmp.ne.s32.totalorder %s51, %s53
      %p57 = scmp.eq.s32.totalorder %s17, 0
      %p58 = por %p56, %p57
      %p59 = scmp.ne.s32.totalorder %s51, %s53
      %p60 = scmp.eq.s32.totalorder %s22, 1
      %p61 = por %p59, %p60
      %p62 = scmp.ne.s32.totalorder %s53, %s54
      %p63 = scmp.eq.s32.totalorder %s22, 0
      %p64 = por %p62, %p63
      %p65 = scmp.ne.s32.totalorder %s53, %s54
      %p66 = scmp.eq.s32.totalorder %s23, 1
      %p67 = por %p65, %p66
      %p69 = scmp.ne.s32.totalorder %s54, %s68
      %p70 = scmp.eq.s32.totalorder %s23, 0
      %p71 = por %p69, %p70
      %s73 = sadd.s32 %s72, 1
      %p76 = scmp.eq.s32.totalorder %s17, 1
      %p77 = scmp.ne.s32.totalorder %s72, %s74
      %p78 = scmp.eq.s32.totalorder %s17, 0
      %p79 = por %p77, %p78
      %p80 = scmp.ne.s32.totalorder %s72, %s74
      %p81 = scmp.eq.s32.totalorder %s22, 1
      %p82 = por %p80, %p81
      %p83 = scmp.ne.s32.totalorder %s74, %s75
      %p84 = scmp.eq.s32.totalorder %s22, 0
      %p85 = por %p83, %p84
      %p86 = scmp.ne.s32.totalorder %s74, %s75
      %p87 = scmp.eq.s32.totalorder %s23, 1
      %p88 = por %p86, %p87
      %p90 = scmp.ne.s32.totalorder %s75, %s89
      %p91 = scmp.eq.s32.totalorder %s23, 0
      %p92 = por %p90, %p91
      %s94 = sadd.s32 %s93, 1
      %p97 = scmp.eq.s32.totalorder %s17, 1
      %p98 = scmp.ne.s32.totalorder %s93, %s95
      %p99 = scmp.eq.s32.totalorder %s17, 0
      %p100 = por %p98, %p99
      %p101 = scmp.ne.s32.totalorder %s93, %s95
      %p102 = scmp.eq.s32.totalorder %s22, 1
      %p103 = por %p101, %p102
      %p104 = scmp.ne.s32.totalorder %s95, %s96
      %p105 = scmp.eq.s32.totalorder %s22, 0
      %p106 = por %p104, %p105
      %p107 = scmp.ne.s32.totalorder %s95, %s96
      %p108 = scmp.eq.s32.totalorder %s23, 1
      %p109 = por %p107, %p108
      %p111 = scmp.ne.s32.totalorder %s96, %s110
      %p112 = scmp.eq.s32.totalorder %s23, 0
      %p113 = por %p111, %p112
      %s114 = ssub.s32 %s17, %s24
      %p115 = scmp.eq.s32.totalorder %s114, 0
      %s117 = sadd.s32 %s116, 1
      %s118 = scalar_select %p115, %s116, %s117
      %p121 = pneg %p115
      %p122 = scmp.eq.s32.totalorder %s17, 1
      %p123 = por %p121, %p122
      %p124 = scmp.ne.s32.totalorder %s116, %s119
      %p125 = scmp.eq.s32.totalorder %s17, 0
      %p126 = por %p124, %p125
      %p127 = scmp.ne.s32.totalorder %s116, %s119
      %p128 = scmp.eq.s32.totalorder %s22, 1
      %p129 = por %p127, %p128
      %p130 = scmp.ne.s32.totalorder %s119, %s120
      %p131 = scmp.eq.s32.totalorder %s22, 0
      %p132 = por %p130, %p131
      %p133 = scmp.ne.s32.totalorder %s119, %s120
      %p134 = scmp.eq.s32.totalorder %s23, 1
      %p135 = por %p133, %p134
      %p137 = scmp.ne.s32.totalorder %s120, %s136
      %p138 = scmp.eq.s32.totalorder %s23, 0
      %p139 = por %p137, %p138
      %p140 = scmp.le.s32.totalorder 1, %s17
      %p141 = scmp.lt.s32.totalorder %s17, 3
      %p142 = pnand %p140, %p141
      %p143 = pneg %p142
      // Predicated region
      $region9: #{tpu_custom_call.1} parent=5 // pred_check
        _
      $region10: #{tpu_custom_call.1} parent=5 // pred_check_branch
        %145 = sbr.rel (%p142) target = $region12
      $region11: #{tpu_custom_call.1} parent=5 // pred_region
        %s146 = ssub.s32 %s17, 1
        // Predicated region
        $region13: #{tpu_custom_call.1} parent=11 // pred_check
          %p147 = pneg %p64
        $region14: #{tpu_custom_call.1} parent=11 // pred_check_branch
          %149 = sbr.rel (%p147) target = $region16
        $region15: #{tpu_custom_call.1} parent=11 // pred_region
          %s151 = ssub.s32 256, 256
          %152 = vsyncadd [#allocation6], %s151
          %s153 = sshll.u32 [#allocation5], 4
          %s154 = int_to_ptr.vmem [resolvable:$true] %s153
          %159 = dma.hbm_to_vmem [thread:$0]  %s1, 256, %s154, [#allocation6], 64, 64, 4
        $region16: #{tpu_custom_call.1} parent=11 // pred_fallthru
          _
        // Predicated region
        $region17: #{tpu_custom_call.1} parent=11 // pred_check
          %p160 = pneg %p85
        $region18: #{tpu_custom_call.1} parent=11 // pred_check_branch
          %162 = sbr.rel (%p160) target = $region20
        $region19: #{tpu_custom_call.1} parent=11 // pred_region
          %s164 = ssub.s32 256, 256
          %165 = vsyncadd [#allocation6], %s164
          %s166 = sshll.u32 [#allocation7], 4
          %s167 = int_to_ptr.vmem [resolvable:$true] %s166
          %172 = dma.hbm_to_vmem [thread:$0]  %s2, 256, %s167, [#allocation6], 64, 64, 4
        $region20: #{tpu_custom_call.1} parent=11 // pred_fallthru
          _
        // Predicated region
        $region21: #{tpu_custom_call.1} parent=11 // pred_check
          %p173 = pneg %p106
        $region22: #{tpu_custom_call.1} parent=11 // pred_check_branch
          %175 = sbr.rel (%p173) target = $region24
        $region23: #{tpu_custom_call.1} parent=11 // pred_region
          _
        $region24: #{tpu_custom_call.1} parent=11 // pred_fallthru
          _
      $region12: #{tpu_custom_call.1} parent=5 // pred_fallthru
        _
      %p176 = scmp.lt.s32.totalorder %s17, 2
      // Predicated region
      $region25: #{tpu_custom_call.1} parent=5 // pred_check
        %p177 = pneg %p176
      $region26: #{tpu_custom_call.1} parent=5 // pred_check_branch
        %179 = sbr.rel (%p177) target = $region28
      $region27: #{tpu_custom_call.1} parent=5 // pred_region
        // Predicated region
        $region29: #{tpu_custom_call.1} parent=27 // pred_check
          %p180 = pneg %p37
        $region30: #{tpu_custom_call.1} parent=27 // pred_check_branch
          %182 = sbr.rel (%p180) target = $region32
        $region31: #{tpu_custom_call.1} parent=27 // pred_region
          %s183 = sand.u32 %s27, 1
          %s184 = scalar_lea.sflag [#allocation3], %s183
          %s185 = sand.u32 %s27, 1
          %s186 = smul.addr %s185, 8
          %s187 = scalar_lea.vmem [#allocation2], %s186
          %s189 = ssub.s32 128, 128
          %190 = vsyncadd %s184, %s189
          %s191 = smul.addr %s17, 128
          %s192 = scalar_lea.hbm %s0, %s191
          %s194 = sshll.u32 %s187, 4
          %s195 = int_to_ptr.vmem [resolvable:$true] %s194
          %197 = dma.hbm_to_vmem [thread:$0]  %s192, 128, %s195, %s184
        $region32: #{tpu_custom_call.1} parent=27 // pred_fallthru
          _
      $region28: #{tpu_custom_call.1} parent=5 // pred_fallthru
        _
      %p198 = scmp.le.s32.totalorder 1, %s17
      %p199 = scmp.lt.s32.totalorder %s17, 3
      %p200 = pnand %p198, %p199
      %p201 = pneg %p200
      // Predicated region
      $region33: #{tpu_custom_call.1} parent=5 // pred_check
        _
      $region34: #{tpu_custom_call.1} parent=5 // pred_check_branch
        %203 = sbr.rel (%p200) target = $region36
      $region35: #{tpu_custom_call.1} parent=5 // pred_region
        %s204 = ssub.s32 %s17, 1
        %s205 = sand.u32 %s30, 1
        %s206 = scalar_lea.sflag [#allocation3], %s205
        %s207 = sand.u32 %s30, 1
        %s208 = smul.addr %s207, 8
        %s209 = scalar_lea.vmem [#allocation2], %s208
        // Predicated region
        $region37: #{tpu_custom_call.1} parent=35 // pred_check
          %p210 = pneg %p43
        $region38: #{tpu_custom_call.1} parent=35 // pred_check_branch
          %212 = sbr.rel (%p210) target = $region40
        $region39: #{tpu_custom_call.1} parent=35 // pred_region
          %213 = dma.done %s206, 128
        $region40: #{tpu_custom_call.1} parent=35 // pred_fallthru
          _
        // Predicated region
        $region41: #{tpu_custom_call.1} parent=35 // pred_check
          %p214 = pneg %p64
        $region42: #{tpu_custom_call.1} parent=35 // pred_check_branch
          %216 = sbr.rel (%p214) target = $region44
        $region43: #{tpu_custom_call.1} parent=35 // pred_region
          %217 = dma.done [#allocation6], 256
        $region44: #{tpu_custom_call.1} parent=35 // pred_fallthru
          _
        // Predicated region
        $region45: #{tpu_custom_call.1} parent=35 // pred_check
          %p218 = pneg %p85
        $region46: #{tpu_custom_call.1} parent=35 // pred_check_branch
          %220 = sbr.rel (%p218) target = $region48
        $region47: #{tpu_custom_call.1} parent=35 // pred_region
          %221 = dma.done [#allocation6], 256
        $region48: #{tpu_custom_call.1} parent=35 // pred_fallthru
          _
        %s222 = sand.u32 %s30, 1
        %s223 = scalar_lea.sflag [#allocation3], %s222
        %s224 = sand.u32 %s30, 1
        %s225 = smul.addr %s224, 8
        %s226 = scalar_lea.vmem [#allocation2], %s225
        %p227 = pneg %p43
        %p228 = pneg %p40
        %p229 = pneg %p64
        %p230 = pneg %p61
        %p231 = pneg %p85
        %p232 = pneg %p82
        %p233 = pneg %p106
        %p234 = pneg %p103
        %p235 = pneg %p132
        %p236 = pneg %p129
        %s237 = sand.u32 %s119, 1
        %s238 = scalar_lea.sflag [#allocation4], %s237
        %s239 = sand.u32 %s119, 1
        %s240 = smul.addr %s239, 8
        %s241 = scalar_lea.vmem [#allocation8], %s240
        %v243 = vld [vmem:[%s209] sm:$0xff]
        %v244 = vpack.c.bf16 %v243, %v243
        %v245 = vld [vmem:[#allocation5] sm:$0xf]
        %v246 = vld [vmem:[#allocation5 + $0x4] sm:$0xf]
        %v247 = vld [vmem:[#allocation5 + $0x8] sm:$0xf]
        %v248 = vld [vmem:[#allocation5 + $0xc] sm:$0xf]
        %v253 = vunpack.c.l.b16 %v245
        %v254 = vunpack.c.l.b16 %v246
        %v255 = vunpack.c.l.b16 %v247
        %v256 = vunpack.c.l.b16 %v248
        %v257 = vpack.c.b16 %v254, %v253
        %v258 = vpack.c.b16 %v256, %v255
        %vm261 = vcmask 261120
        %v263 = vsel %vm261, %v244, 0
        %265 = vmatprep.subr.bf16.mxu0 0
        %266 = vmatpush1.bf16.msra.mxu0 %v257
        %267 = vmatprep.subr.bf16.mxu0 0
        %268 = vmatpush1.bf16.msra.mxu0 %v258
        %269 = vmatprep.subr.bf16.mxu0 0
        %270 = vmatpush1.bf16.msra.mxu0 0
        %271 = vmatprep.subr.bf16.mxu0 0
        %272 = vmatpush1.bf16.msra.mxu0 0
        %273 = vmatprep.subr.bf16.mxu0 0
        %274 = vmatpush1.bf16.msra.mxu0 0
        %275 = vmatprep.subr.bf16.mxu0 0
        %276 = vmatpush1.bf16.msra.mxu0 0
        %277 = vmatprep.subr.bf16.mxu0 0
        %278 = vmatpush1.bf16.msra.mxu0 0
        %279 = vmatprep.subr.bf16.mxu0 0
        %280 = vmatpush1.bf16.msra.mxu0 0
        %281 = vmatprep.subr.bf16.mxu0 0
        %282 = vmatpush1.bf16.msra.mxu0 0
        %283 = vmatprep.subr.bf16.mxu0 0
        %284 = vmatpush1.bf16.msra.mxu0 0
        %285 = vmatprep.subr.bf16.mxu0 0
        %286 = vmatpush1.bf16.msra.mxu0 0
        %287 = vmatprep.subr.bf16.mxu0 0
        %288 = vmatpush1.bf16.msra.mxu0 0
        %289 = vmatprep.subr.bf16.mxu0 0
        %290 = vmatpush1.bf16.msra.mxu0 0
        %291 = vmatprep.subr.bf16.mxu0 0
        %292 = vmatpush1.bf16.msra.mxu0 0
        %293 = vmatprep.subr.bf16.mxu0 0
        %294 = vmatpush1.bf16.msra.mxu0 0
        %295 = vmatprep.subr.bf16.mxu0 0
        %296 = vmatpush1.bf16.msra.mxu0 0
        %297 = vmatprep.mubr.bf16.mxu0 0
        %298 = vmatmul.mubr.bf16.gmra.mrb[0].mxu0 %v263
        %v299 = vpop.f32.mrb[0].mxu0
        %v300 = vadd.f32 0.0, %v299
        %v301 = vpop.f32.mrb[0].mxu0
        %v302 = vpop.f32.mrb[0].mxu0
        %v303 = vpop.f32.mrb[0].mxu0
        %304 = vdwg.mxu0
        %306 = vrot.lane.b32.xlu0 %v300, 120
        %v307 = vpop.permute.xlu0 %306
        %309 = vrot.lane.b32.xlu0 %v300, 112
        %v310 = vpop.permute.xlu0 %309
        %312 = vrot.lane.b32.xlu0 %v300, 104
        %v313 = vpop.permute.xlu0 %312
        %v315 = vpack.c.bf16 %v300, %v300
        %v316 = vpack.c.bf16 %v307, %v307
        %v317 = vpack.c.bf16 %v310, %v310
        %v318 = vpack.c.bf16 %v313, %v313
        %320 = vrot.lane.b32.xlu0 %v315, 96
        %v321 = vpop.permute.xlu0 %320
        %vm322 = vcmask 64512
        %v324 = vsel %vm322, %v315, 0
        %v327 = vsel %vm322, %v321, 0
        %329 = vmatprep.subr.bf16.mxu0 0
        %330 = vmatpush1.bf16.xpose.msra.mxu0 %v327
        %331 = vmatprep.subr.bf16.mxu0 0
        %332 = vmatpush1.bf16.xpose.msra.mxu0 0
        %333 = vmatprep.subr.bf16.mxu0 0
        %334 = vmatpush1.bf16.xpose.msra.mxu0 0
        %335 = vmatprep.subr.bf16.mxu0 0
        %336 = vmatpush1.bf16.xpose.msra.mxu0 0
        %337 = vmatprep.subr.bf16.mxu0 0
        %338 = vmatpush1.bf16.xpose.msra.mxu0 0
        %339 = vmatprep.subr.bf16.mxu0 0
        %340 = vmatpush1.bf16.xpose.msra.mxu0 0
        %341 = vmatprep.subr.bf16.mxu0 0
        %342 = vmatpush1.bf16.xpose.msra.mxu0 0
        %343 = vmatprep.subr.bf16.mxu0 0
        %344 = vmatpush1.bf16.xpose.msra.mxu0 0
        %345 = vmatprep.subr.bf16.mxu0 0
        %346 = vmatpush1.bf16.xpose.msra.mxu0 0
        %347 = vmatprep.subr.bf16.mxu0 0
        %348 = vmatpush1.bf16.xpose.msra.mxu0 0
        %349 = vmatprep.subr.bf16.mxu0 0
        %350 = vmatpush1.bf16.xpose.msra.mxu0 0
        %351 = vmatprep.subr.bf16.mxu0 0
        %352 = vmatpush1.bf16.xpose.msra.mxu0 0
        %353 = vmatprep.subr.bf16.mxu0 0
        %354 = vmatpush1.bf16.xpose.msra.mxu0 0
        %355 = vmatprep.subr.bf16.mxu0 0
        %356 = vmatpush1.bf16.xpose.msra.mxu0 0
        %357 = vmatprep.subr.bf16.mxu0 0
        %358 = vmatpush1.bf16.xpose.msra.mxu0 0
        %359 = vmatprep.subr.bf16.mxu0 0
        %360 = vmatpush1.bf16.xpose.msra.mxu0 0
        %361 = vmatprep.mubr.bf16.mxu0 0
        %362 = vmatmul.mubr.bf16.gmra.mrb[0].mxu0 %v324
        %v363 = vpop.f32.mrb[0].mxu0
        %v364 = vadd.f32 0.0, %v363
        %v365 = vpop.f32.mrb[0].mxu0
        %v366 = vpop.f32.mrb[0].mxu0
        %v367 = vpop.f32.mrb[0].mxu0
        %368 = vdwg.mxu0
        %370 = vrot.lane.b32.xlu0 %v316, 96
        %v371 = vpop.permute.xlu0 %370
        %v373 = vsel %vm322, %v316, 0
        %v376 = vsel %vm322, %v371, 0
        %378 = vmatprep.subr.bf16.mxu0 0
        %379 = vmatpush1.bf16.xpose.msra.mxu0 %v376
        %380 = vmatprep.subr.bf16.mxu0 0
        %381 = vmatpush1.bf16.xpose.msra.mxu0 0
        %382 = vmatprep.subr.bf16.mxu0 0
        %383 = vmatpush1.bf16.xpose.msra.mxu0 0
        %384 = vmatprep.subr.bf16.mxu0 0
        %385 = vmatpush1.bf16.xpose.msra.mxu0 0
        %386 = vmatprep.subr.bf16.mxu0 0
        %387 = vmatpush1.bf16.xpose.msra.mxu0 0
        %388 = vmatprep.subr.bf16.mxu0 0
        %389 = vmatpush1.bf16.xpose.msra.mxu0 0
        %390 = vmatprep.subr.bf16.mxu0 0
        %391 = vmatpush1.bf16.xpose.msra.mxu0 0
        %392 = vmatprep.subr.bf16.mxu0 0
        %393 = vmatpush1.bf16.xpose.msra.mxu0 0
        %394 = vmatprep.subr.bf16.mxu0 0
        %395 = vmatpush1.bf16.xpose.msra.mxu0 0
        %396 = vmatprep.subr.bf16.mxu0 0
        %397 = vmatpush1.bf16.xpose.msra.mxu0 0
        %398 = vmatprep.subr.bf16.mxu0 0
        %399 = vmatpush1.bf16.xpose.msra.mxu0 0
        %400 = vmatprep.subr.bf16.mxu0 0
        %401 = vmatpush1.bf16.xpose.msra.mxu0 0
        %402 = vmatprep.subr.bf16.mxu0 0
        %403 = vmatpush1.bf16.xpose.msra.mxu0 0
        %404 = vmatprep.subr.bf16.mxu0 0
        %405 = vmatpush1.bf16.xpose.msra.mxu0 0
        %406 = vmatprep.subr.bf16.mxu0 0
        %407 = vmatpush1.bf16.xpose.msra.mxu0 0
        %408 = vmatprep.subr.bf16.mxu0 0
        %409 = vmatpush1.bf16.xpose.msra.mxu0 0
        %410 = vmatprep.mubr.bf16.mxu0 0
        %411 = vmatmul.mubr.bf16.gmra.mrb[0].mxu0 %v373
        %v412 = vpop.f32.mrb[0].mxu0
        %v413 = vadd.f32 0.0, %v412
        %v414 = vpop.f32.mrb[0].mxu0
        %v415 = vpop.f32.mrb[0].mxu0
        %v416 = vpop.f32.mrb[0].mxu0
        %417 = vdwg.mxu0
        %419 = vrot.lane.b32.xlu0 %v317, 96
        %v420 = vpop.permute.xlu0 %419
        %v422 = vsel %vm322, %v317, 0
        %v425 = vsel %vm322, %v420, 0
        %427 = vmatprep.subr.bf16.mxu0 0
        %428 = vmatpush1.bf16.xpose.msra.mxu0 %v425
        %429 = vmatprep.subr.bf16.mxu0 0
        %430 = vmatpush1.bf16.xpose.msra.mxu0 0
        %431 = vmatprep.subr.bf16.mxu0 0
        %432 = vmatpush1.bf16.xpose.msra.mxu0 0
        %433 = vmatprep.subr.bf16.mxu0 0
        %434 = vmatpush1.bf16.xpose.msra.mxu0 0
        %435 = vmatprep.subr.bf16.mxu0 0
        %436 = vmatpush1.bf16.xpose.msra.mxu0 0
        %437 = vmatprep.subr.bf16.mxu0 0
        %438 = vmatpush1.bf16.xpose.msra.mxu0 0
        %439 = vmatprep.subr.bf16.mxu0 0
        %440 = vmatpush1.bf16.xpose.msra.mxu0 0
        %441 = vmatprep.subr.bf16.mxu0 0
        %442 = vmatpush1.bf16.xpose.msra.mxu0 0
        %443 = vmatprep.subr.bf16.mxu0 0
        %444 = vmatpush1.bf16.xpose.msra.mxu0 0
        %445 = vmatprep.subr.bf16.mxu0 0
        %446 = vmatpush1.bf16.xpose.msra.mxu0 0
        %447 = vmatprep.subr.bf16.mxu0 0
        %448 = vmatpush1.bf16.xpose.msra.mxu0 0
        %449 = vmatprep.subr.bf16.mxu0 0
        %450 = vmatpush1.bf16.xpose.msra.mxu0 0
        %451 = vmatprep.subr.bf16.mxu0 0
        %452 = vmatpush1.bf16.xpose.msra.mxu0 0
        %453 = vmatprep.subr.bf16.mxu0 0
        %454 = vmatpush1.bf16.xpose.msra.mxu0 0
        %455 = vmatprep.subr.bf16.mxu0 0
        %456 = vmatpush1.bf16.xpose.msra.mxu0 0
        %457 = vmatprep.subr.bf16.mxu0 0
        %458 = vmatpush1.bf16.xpose.msra.mxu0 0
        %459 = vmatprep.mubr.bf16.mxu0 0
        %460 = vmatmul.mubr.bf16.gmra.mrb[0].mxu0 %v422
        %v461 = vpop.f32.mrb[0].mxu0
        %v462 = vadd.f32 0.0, %v461
        %v463 = vpop.f32.mrb[0].mxu0
        %v464 = vpop.f32.mrb[0].mxu0
        %v465 = vpop.f32.mrb[0].mxu0
        %466 = vdwg.mxu0
        %468 = vrot.lane.b32.xlu0 %v318, 96
        %v469 = vpop.permute.xlu0 %468
        %v471 = vsel %vm322, %v318, 0
        %v474 = vsel %vm322, %v469, 0
        %476 = vmatprep.subr.bf16.mxu0 0
        %477 = vmatpush1.bf16.xpose.msra.mxu0 %v474
        %478 = vmatprep.subr.bf16.mxu0 0
        %479 = vmatpush1.bf16.xpose.msra.mxu0 0
        %480 = vmatprep.subr.bf16.mxu0 0
        %481 = vmatpush1.bf16.xpose.msra.mxu0 0
        %482 = vmatprep.subr.bf16.mxu0 0
        %483 = vmatpush1.bf16.xpose.msra.mxu0 0
        %484 = vmatprep.subr.bf16.mxu0 0
        %485 = vmatpush1.bf16.xpose.msra.mxu0 0
        %486 = vmatprep.subr.bf16.mxu0 0
        %487 = vmatpush1.bf16.xpose.msra.mxu0 0
        %488 = vmatprep.subr.bf16.mxu0 0
        %489 = vmatpush1.bf16.xpose.msra.mxu0 0
        %490 = vmatprep.subr.bf16.mxu0 0
        %491 = vmatpush1.bf16.xpose.msra.mxu0 0
        %492 = vmatprep.subr.bf16.mxu0 0
        %493 = vmatpush1.bf16.xpose.msra.mxu0 0
        %494 = vmatprep.subr.bf16.mxu0 0
        %495 = vmatpush1.bf16.xpose.msra.mxu0 0
        %496 = vmatprep.subr.bf16.mxu0 0
        %497 = vmatpush1.bf16.xpose.msra.mxu0 0
        %498 = vmatprep.subr.bf16.mxu0 0
        %499 = vmatpush1.bf16.xpose.msra.mxu0 0
        %500 = vmatprep.subr.bf16.mxu0 0
        %501 = vmatpush1.bf16.xpose.msra.mxu0 0
        %502 = vmatprep.subr.bf16.mxu0 0
        %503 = vmatpush1.bf16.xpose.msra.mxu0 0
        %504 = vmatprep.subr.bf16.mxu0 0
        %505 = vmatpush1.bf16.xpose.msra.mxu0 0
        %506 = vmatprep.subr.bf16.mxu0 0
        %507 = vmatpush1.bf16.xpose.msra.mxu0 0
        %508 = vmatprep.mubr.bf16.mxu0 0
        %509 = vmatmul.mubr.bf16.gmra.mrb[0].mxu0 %v471
        %v510 = vpop.f32.mrb[0].mxu0
        %v511 = vadd.f32 0.0, %v510
        %v512 = vpop.f32.mrb[0].mxu0
        %v513 = vpop.f32.mrb[0].mxu0
        %v514 = vpop.f32.mrb[0].mxu0
        %515 = vdwg.mxu0
        %v516 = vmul.f32 %v364, 0.17677669
        %v517 = vmul.f32 %v413, 0.17677669
        %v518 = vmul.f32 %v462, 0.17677669
        %v519 = vmul.f32 %v511, 0.17677669
        %v520 = vlaneseq
        %v521 = vshrl.u32 %v520, 7
        %v522 = vlaneseq
        %v523 = vand.u32 %v522, 127
        %vm524 = vcmp.ge.s32.totalorder %v521, %v523
        %v525 = vsel %vm524, 0.0, -1e+30
        %v526 = vadd.f32 %v516, %v525
        %v527 = vadd.f32 %v517, %v525
        %v528 = vadd.f32 %v518, %v525
        %v529 = vadd.f32 %v519, %v525
        %v530 = vsel %vm322, %v526, -inf
        %531 = vmax.xlane.f32.xlu0 %v530
        %v532 = vpop.xlane.xlu0 %531
        %v533 = vsel %vm322, %v527, -inf
        %534 = vmax.xlane.f32.xlu0 %v533
        %v535 = vpop.xlane.xlu0 %534
        %v536 = vsel %vm322, %v528, -inf
        %537 = vmax.xlane.f32.xlu0 %v536
        %v538 = vpop.xlane.xlu0 %537
        %v539 = vsel %vm322, %v529, -inf
        %540 = vmax.xlane.f32.xlu0 %v539
        %v541 = vpop.xlane.xlu0 %540
        %v542 = vsub.f32 %v526, %v532
        %v543 = vsub.f32 %v527, %v535
        %v544 = vsub.f32 %v528, %v538
        %v545 = vsub.f32 %v529, %v541
        %v546 = vmul.f32 %v542, 1.442695
        %v547 = vpow.pop %v546
        %v548 = vmul.f32 %v543, 1.442695
        %v549 = vpow.pop %v548
        %v550 = vmul.f32 %v544, 1.442695
        %v551 = vpow.pop %v550
        %v552 = vmul.f32 %v545, 1.442695
        %v553 = vpow.pop %v552
        %v554 = vsel %vm322, %v547, 0.0
        %555 = vadd.xlane.f32.xlu0 %v554
        %v556 = vpop.xlane.xlu0 %555
        %v557 = vsel %vm322, %v549, 0.0
        %558 = vadd.xlane.f32.xlu0 %v557
        %v559 = vpop.xlane.xlu0 %558
        %v560 = vsel %vm322, %v551, 0.0
        %561 = vadd.xlane.f32.xlu0 %v560
        %v562 = vpop.xlane.xlu0 %561
        %v563 = vsel %vm322, %v553, 0.0
        %564 = vadd.xlane.f32.xlu0 %v563
        %v565 = vpop.xlane.xlu0 %564
        %v566 = vrcp.pop %v556
        %v567 = vrcp.pop %v559
        %v568 = vrcp.pop %v562
        %v569 = vrcp.pop %v565
        %v570 = vmul.f32 %v547, %v566
        %v571 = vmul.f32 %v549, %v567
        %v572 = vmul.f32 %v551, %v568
        %v573 = vmul.f32 %v553, %v569
        %v574 = vpack.c.bf16 %v570, %v570
        %v575 = vpack.c.bf16 %v571, %v571
        %v576 = vpack.c.bf16 %v572, %v572
        %v577 = vpack.c.bf16 %v573, %v573
        %578 = vrot.lane.b32.xlu0 %v315, 64
        %v579 = vpop.permute.xlu0 %578
        %v581 = vsel %vm322, %v574, 0
        %vm583 = vcmask 1043456
        %v585 = vsel %vm583, %v579, 0
        %587 = vmatprep.subr.bf16.mxu0 0
        %588 = vmatpush1.bf16.msra.mxu0 %v585
        %589 = vmatprep.subr.bf16.mxu0 0
        %590 = vmatpush1.bf16.msra.mxu0 0
        %591 = vmatprep.subr.bf16.mxu0 0
        %592 = vmatpush1.bf16.msra.mxu0 0
        %593 = vmatprep.subr.bf16.mxu0 0
        %594 = vmatpush1.bf16.msra.mxu0 0
        %595 = vmatprep.subr.bf16.mxu0 0
        %596 = vmatpush1.bf16.msra.mxu0 0
        %597 = vmatprep.subr.bf16.mxu0 0
        %598 = vmatpush1.bf16.msra.mxu0 0
        %599 = vmatprep.subr.bf16.mxu0 0
        %600 = vmatpush1.bf16.msra.mxu0 0
        %601 = vmatprep.subr.bf16.mxu0 0
        %602 = vmatpush1.bf16.msra.mxu0 0
        %603 = vmatprep.subr.bf16.mxu0 0
        %604 = vmatpush1.bf16.msra.mxu0 0
        %605 = vmatprep.subr.bf16.mxu0 0
        %606 = vmatpush1.bf16.msra.mxu0 0
        %607 = vmatprep.subr.bf16.mxu0 0
        %608 = vmatpush1.bf16.msra.mxu0 0
        %609 = vmatprep.subr.bf16.mxu0 0
        %610 = vmatpush1.bf16.msra.mxu0 0
        %611 = vmatprep.subr.bf16.mxu0 0
        %612 = vmatpush1.bf16.msra.mxu0 0
        %613 = vmatprep.subr.bf16.mxu0 0
        %614 = vmatpush1.bf16.msra.mxu0 0
        %615 = vmatprep.subr.bf16.mxu0 0
        %616 = vmatpush1.bf16.msra.mxu0 0
        %617 = vmatprep.subr.bf16.mxu0 0
        %618 = vmatpush1.bf16.msra.mxu0 0
        %619 = vmatprep.mubr.bf16.mxu0 0
        %620 = vmatmul.mubr.bf16.gmra.mrb[0].mxu0 %v581
        %v621 = vpop.f32.mrb[0].mxu0
        %v622 = vadd.f32 0.0, %v621
        %v623 = vpop.f32.mrb[0].mxu0
        %v624 = vpop.f32.mrb[0].mxu0
        %v625 = vpop.f32.mrb[0].mxu0
        %626 = vdwg.mxu0
        %627 = vrot.lane.b32.xlu0 %v316, 64
        %v628 = vpop.permute.xlu0 %627
        %v630 = vsel %vm322, %v575, 0
        %v633 = vsel %vm583, %v628, 0
        %635 = vmatprep.subr.bf16.mxu0 0
        %636 = vmatpush1.bf16.msra.mxu0 %v633
        %637 = vmatprep.subr.bf16.mxu0 0
        %638 = vmatpush1.bf16.msra.mxu0 0
        %639 = vmatprep.subr.bf16.mxu0 0
        %640 = vmatpush1.bf16.msra.mxu0 0
        %641 = vmatprep.subr.bf16.mxu0 0
        %642 = vmatpush1.bf16.msra.mxu0 0
        %643 = vmatprep.subr.bf16.mxu0 0
        %644 = vmatpush1.bf16.msra.mxu0 0
        %645 = vmatprep.subr.bf16.mxu0 0
        %646 = vmatpush1.bf16.msra.mxu0 0
        %647 = vmatprep.subr.bf16.mxu0 0
        %648 = vmatpush1.bf16.msra.mxu0 0
        %649 = vmatprep.subr.bf16.mxu0 0
        %650 = vmatpush1.bf16.msra.mxu0 0
        %651 = vmatprep.subr.bf16.mxu0 0
        %652 = vmatpush1.bf16.msra.mxu0 0
        %653 = vmatprep.subr.bf16.mxu0 0
        %654 = vmatpush1.bf16.msra.mxu0 0
        %655 = vmatprep.subr.bf16.mxu0 0
        %656 = vmatpush1.bf16.msra.mxu0 0
        %657 = vmatprep.subr.bf16.mxu0 0
        %658 = vmatpush1.bf16.msra.mxu0 0
        %659 = vmatprep.subr.bf16.mxu0 0
        %660 = vmatpush1.bf16.msra.mxu0 0
        %661 = vmatprep.subr.bf16.mxu0 0
        %662 = vmatpush1.bf16.msra.mxu0 0
        %663 = vmatprep.subr.bf16.mxu0 0
        %664 = vmatpush1.bf16.msra.mxu0 0
        %665 = vmatprep.subr.bf16.mxu0 0
        %666 = vmatpush1.bf16.msra.mxu0 0
        %667 = vmatprep.mubr.bf16.mxu0 0
        %668 = vmatmul.mubr.bf16.gmra.mrb[0].mxu0 %v630
        %v669 = vpop.f32.mrb[0].mxu0
        %v670 = vadd.f32 0.0, %v669
        %v671 = vpop.f32.mrb[0].mxu0
        %v672 = vpop.f32.mrb[0].mxu0
        %v673 = vpop.f32.mrb[0].mxu0
        %674 = vdwg.mxu0
        %675 = vrot.lane.b32.xlu0 %v317, 64
        %v676 = vpop.permute.xlu0 %675
        %v678 = vsel %vm322, %v576, 0
        %v681 = vsel %vm583, %v676, 0
        %683 = vmatprep.subr.bf16.mxu0 0
        %684 = vmatpush1.bf16.msra.mxu0 %v681
        %685 = vmatprep.subr.bf16.mxu0 0
        %686 = vmatpush1.bf16.msra.mxu0 0
        %687 = vmatprep.subr.bf16.mxu0 0
        %688 = vmatpush1.bf16.msra.mxu0 0
        %689 = vmatprep.subr.bf16.mxu0 0
        %690 = vmatpush1.bf16.msra.mxu0 0
        %691 = vmatprep.subr.bf16.mxu0 0
        %692 = vmatpush1.bf16.msra.mxu0 0
        %693 = vmatprep.subr.bf16.mxu0 0
        %694 = vmatpush1.bf16.msra.mxu0 0
        %695 = vmatprep.subr.bf16.mxu0 0
        %696 = vmatpush1.bf16.msra.mxu0 0
        %697 = vmatprep.subr.bf16.mxu0 0
        %698 = vmatpush1.bf16.msra.mxu0 0
        %699 = vmatprep.subr.bf16.mxu0 0
        %700 = vmatpush1.bf16.msra.mxu0 0
        %701 = vmatprep.subr.bf16.mxu0 0
        %702 = vmatpush1.bf16.msra.mxu0 0
        %703 = vmatprep.subr.bf16.mxu0 0
        %704 = vmatpush1.bf16.msra.mxu0 0
        %705 = vmatprep.subr.bf16.mxu0 0
        %706 = vmatpush1.bf16.msra.mxu0 0
        %707 = vmatprep.subr.bf16.mxu0 0
        %708 = vmatpush1.bf16.msra.mxu0 0
        %709 = vmatprep.subr.bf16.mxu0 0
        %710 = vmatpush1.bf16.msra.mxu0 0
        %711 = vmatprep.subr.bf16.mxu0 0
        %712 = vmatpush1.bf16.msra.mxu0 0
        %713 = vmatprep.subr.bf16.mxu0 0
        %714 = vmatpush1.bf16.msra.mxu0 0
        %715 = vmatprep.mubr.bf16.mxu0 0
        %716 = vmatmul.mubr.bf16.gmra.mrb[0].mxu0 %v678
        %v717 = vpop.f32.mrb[0].mxu0
        %v718 = vadd.f32 0.0, %v717
        %v719 = vpop.f32.mrb[0].mxu0
        %v720 = vpop.f32.mrb[0].mxu0
        %v721 = vpop.f32.mrb[0].mxu0
        %722 = vdwg.mxu0
        %723 = vrot.lane.b32.xlu0 %v318, 64
        %v724 = vpop.permute.xlu0 %723
        %v726 = vsel %vm322, %v577, 0
        %v729 = vsel %vm583, %v724, 0
        %731 = vmatprep.subr.bf16.mxu0 0
        %732 = vmatpush1.bf16.msra.mxu0 %v729
        %733 = vmatprep.subr.bf16.mxu0 0
        %734 = vmatpush1.bf16.msra.mxu0 0
        %735 = vmatprep.subr.bf16.mxu0 0
        %736 = vmatpush1.bf16.msra.mxu0 0
        %737 = vmatprep.subr.bf16.mxu0 0
        %738 = vmatpush1.bf16.msra.mxu0 0
        %739 = vmatprep.subr.bf16.mxu0 0
        %740 = vmatpush1.bf16.msra.mxu0 0
        %741 = vmatprep.subr.bf16.mxu0 0
        %742 = vmatpush1.bf16.msra.mxu0 0
        %743 = vmatprep.subr.bf16.mxu0 0
        %744 = vmatpush1.bf16.msra.mxu0 0
        %745 = vmatprep.subr.bf16.mxu0 0
        %746 = vmatpush1.bf16.msra.mxu0 0
        %747 = vmatprep.subr.bf16.mxu0 0
        %748 = vmatpush1.bf16.msra.mxu0 0
        %749 = vmatprep.subr.bf16.mxu0 0
        %750 = vmatpush1.bf16.msra.mxu0 0
        %751 = vmatprep.subr.bf16.mxu0 0
        %752 = vmatpush1.bf16.msra.mxu0 0
        %753 = vmatprep.subr.bf16.mxu0 0
        %754 = vmatpush1.bf16.msra.mxu0 0
        %755 = vmatprep.subr.bf16.mxu0 0
        %756 = vmatpush1.bf16.msra.mxu0 0
        %757 = vmatprep.subr.bf16.mxu0 0
        %758 = vmatpush1.bf16.msra.mxu0 0
        %759 = vmatprep.subr.bf16.mxu0 0
        %760 = vmatpush1.bf16.msra.mxu0 0
        %761 = vmatprep.subr.bf16.mxu0 0
        %762 = vmatpush1.bf16.msra.mxu0 0
        %763 = vmatprep.mubr.bf16.mxu0 0
        %764 = vmatmul.mubr.bf16.gmra.mrb[0].mxu0 %v726
        %v765 = vpop.f32.mrb[0].mxu0
        %v766 = vadd.f32 0.0, %v765
        %v767 = vpop.f32.mrb[0].mxu0
        %v768 = vpop.f32.mrb[0].mxu0
        %v769 = vpop.f32.mrb[0].mxu0
        %770 = vdwg.mxu0
        %772 = vrot.lane.b32.xlu0 %v670, 8
        %v773 = vpop.permute.xlu0 %772
        %776 = vrot.lane.b32.xlu0 %v718, 16
        %v777 = vpop.permute.xlu0 %776
        %780 = vrot.lane.b32.xlu0 %v766, 24
        %v781 = vpop.permute.xlu0 %780
        %v783 = vsel %vm322, %v622, %v773
        %vm784 = vcmask 130048
        %v785 = vsel %vm784, %v783, %v777
        %vm786 = vcmask 195584
        %v787 = vsel %vm786, %v785, %v781
        %v788 = vpack.c.bf16 %v787, %v787
        %v789 = vld [vmem:[#allocation7] sm:$0xf]
        %v790 = vld [vmem:[#allocation7 + $0x4] sm:$0xf]
        %v791 = vld [vmem:[#allocation7 + $0x8] sm:$0xf]
        %v792 = vld [vmem:[#allocation7 + $0xc] sm:$0xf]
        %v793 = vld [vmem:[%s3] sm:$0x1]
        %v795 = vlaneseq
        %v796 = vshrl.u32 %v795, 7
        %v797 = vsub.s32 0, %v796
        %v798 = vrot.slane %v793, %v797
        %v804 = vunpack.c.l.b16 %v789
        %v805 = vunpack.c.l.b16 %v790
        %v806 = vunpack.c.l.b16 %v791
        %v807 = vunpack.c.l.b16 %v792
        %v808 = vpack.c.b16 %v805, %v804
        %v809 = vpack.c.b16 %v807, %v806
        %v813 = vsel %vm261, %v788, 0
        %815 = vmatprep.subr.bf16.mxu0 0
        %816 = vmatpush1.bf16.msra.mxu0 %v808
        %817 = vmatprep.subr.bf16.mxu0 0
        %818 = vmatpush1.bf16.msra.mxu0 %v809
        %819 = vmatprep.subr.bf16.mxu0 0
        %820 = vmatpush1.bf16.msra.mxu0 0
        %821 = vmatprep.subr.bf16.mxu0 0
        %822 = vmatpush1.bf16.msra.mxu0 0
        %823 = vmatprep.subr.bf16.mxu0 0
        %824 = vmatpush1.bf16.msra.mxu0 0
        %825 = vmatprep.subr.bf16.mxu0 0
        %826 = vmatpush1.bf16.msra.mxu0 0
        %827 = vmatprep.subr.bf16.mxu0 0
        %828 = vmatpush1.bf16.msra.mxu0 0
        %829 = vmatprep.subr.bf16.mxu0 0
        %830 = vmatpush1.bf16.msra.mxu0 0
        %831 = vmatprep.subr.bf16.mxu0 0
        %832 = vmatpush1.bf16.msra.mxu0 0
        %833 = vmatprep.subr.bf16.mxu0 0
        %834 = vmatpush1.bf16.msra.mxu0 0
        %835 = vmatprep.subr.bf16.mxu0 0
        %836 = vmatpush1.bf16.msra.mxu0 0
        %837 = vmatprep.subr.bf16.mxu0 0
        %838 = vmatpush1.bf16.msra.mxu0 0
        %839 = vmatprep.subr.bf16.mxu0 0
        %840 = vmatpush1.bf16.msra.mxu0 0
        %841 = vmatprep.subr.bf16.mxu0 0
        %842 = vmatpush1.bf16.msra.mxu0 0
        %843 = vmatprep.subr.bf16.mxu0 0
        %844 = vmatpush1.bf16.msra.mxu0 0
        %845 = vmatprep.subr.bf16.mxu0 0
        %846 = vmatpush1.bf16.msra.mxu0 0
        %847 = vmatprep.mubr.bf16.mxu0 0
        %848 = vmatmul.mubr.bf16.gmra.mrb[0].mxu0 %v813
        %v849 = vpop.f32.mrb[0].mxu0
        %v850 = vadd.f32 %v798, %v849
        %v851 = vpop.f32.mrb[0].mxu0
        %v852 = vpop.f32.mrb[0].mxu0
        %v853 = vpop.f32.mrb[0].mxu0
        %854 = vdwg.mxu0
        %855 = vst.msk [vmem:[%s241] sm:$0xff] %vm261, %v850
        %s856 = sand.u32 %s119, 1
        %s857 = scalar_lea.sflag [#allocation4], %s856
        %s858 = sand.u32 %s119, 1
        %s859 = smul.addr %s858, 8
        %s860 = scalar_lea.vmem [#allocation8], %s859
        // Predicated region
        $region49: #{tpu_custom_call.1} parent=35 // pred_check
          %p861 = pneg %p129
        $region50: #{tpu_custom_call.1} parent=35 // pred_check_branch
          %863 = sbr.rel (%p861) target = $region52
        $region51: #{tpu_custom_call.1} parent=35 // pred_region
          %s865 = ssub.s32 128, 128
          %866 = vsyncadd %s857, %s865
          %s867 = smul.addr %s22, 128
          %s868 = scalar_lea.hbm %s4, %s867
          %s870 = sshll.u32 %s860, 4
          %s871 = int_to_ptr.vmem [resolvable:$true] %s870
          %873 = dma.vmem_to_hbm [thread:$0]  %s871, 128, %s868, %s857
        $region52: #{tpu_custom_call.1} parent=35 // pred_fallthru
          _
      $region36: #{tpu_custom_call.1} parent=5 // pred_fallthru
        _
      %p874 = scmp.le.s32.totalorder 2, %s17
      // Predicated region
      $region53: #{tpu_custom_call.1} parent=5 // pred_check
        %p875 = pneg %p874
      $region54: #{tpu_custom_call.1} parent=5 // pred_check_branch
        %877 = sbr.rel (%p875) target = $region56
      $region55: #{tpu_custom_call.1} parent=5 // pred_region
        %s878 = ssub.s32 %s17, 2
        // Predicated region
        $region57: #{tpu_custom_call.1} parent=55 // pred_check
          %p879 = pneg %p135
        $region58: #{tpu_custom_call.1} parent=55 // pred_check_branch
          %881 = sbr.rel (%p879) target = $region60
        $region59: #{tpu_custom_call.1} parent=55 // pred_region
          %s882 = sand.u32 %s120, 1
          %s883 = scalar_lea.sflag [#allocation4], %s882
          %s884 = sand.u32 %s120, 1
          %s885 = smul.addr %s884, 8
          %s886 = scalar_lea.vmem [#allocation8], %s885
          %887 = dma.done %s883, 128
        $region60: #{tpu_custom_call.1} parent=55 // pred_fallthru
          _
      $region56: #{tpu_custom_call.1} parent=5 // pred_fallthru
        _
    $region6: #{tpu_custom_call.1} parent=1 // loop_footer
      %s21 = sadd.s32 1, %s17
    $region7: #{tpu_custom_call.1} parent=1 // loop_footer_branch
      %16 = sbr.rel target = $region3
    $region8: #{tpu_custom_call.1} parent=1 // loop_exit
      _
    %888 = vsyncpa [#allocation3], 1
    %s889 = scalar_lea.sflag [#allocation3], 1
    %890 = vsyncpa %s889, 1
    %891 = vsyncpa [#allocation6], 1
    %892 = vsyncpa [#allocation4], 1
    %s893 = scalar_lea.sflag [#allocation4], 1
    %894 = vsyncpa %s893, 1

</llo_original>
